<compile_context>
chip_gen: v7x
topology: tpu7x:2x2x1
jax: 0.10.0
libtpu: 0.0.40
codegen_flags: <defaults>
</compile_context>

<pallas_src>
import jax
import jax.numpy as jnp
from jax.experimental import pallas as pl
from jax.experimental.pallas import tpu as pltpu

_INV_SQRT2 = 0.7071067811865476
_LANE = 128   # vreg lane width (fast axis)
_SUB = 8      # sublane granularity


def _sigmoid_tanh(x):
    # sigmoid(x) == 0.5 * tanh(0.5 * x) + 0.5 : one EUP op + two VPU ops,
    # instead of the exp + reciprocal form (two EUP ops).
    return 0.5 * jnp.tanh(0.5 * x) + 0.5


def _gelu_chain_kernel(x_ref, o_ref):
    x = x_ref[...]
    v1 = jnp.maximum(x, 0.0)          # relu
    v2 = v1 * 0.5
    v3 = _sigmoid_tanh(v2)
    v4 = v3 * _INV_SQRT2
    v5 = _sigmoid_tanh(v4)
    o_ref[...] = v5 * _INV_SQRT2


def _chain_ref(x):
    # Pure-JAX reference matching the PyTorch module (torch.sigmoid form).
    v1 = jnp.maximum(x, 0.0)
    v2 = v1 * 0.5
    v3 = jax.nn.sigmoid(v2)
    v4 = v3 * _INV_SQRT2
    v5 = jax.nn.sigmoid(v4)
    return v5 * _INV_SQRT2


def _target_block_bytes():
    """Per-generation block-size target (bytes of one input block)."""
    try:
        kind = jax.devices()[0].device_kind.lower()
    except Exception:  # pragma: no cover - defensive
        kind = ""
    if "v7" in kind:
        # 4 MiB x (in + out) x 2 buffers = 16 MiB, well under v7x's 32 MiB
        # scoped default; amortizes per-step overhead against 3.2 TB/s HBM.
        return 4 << 20
    if "v6" in kind:
        return 2 << 20          # 2 MiB: ~86% of v6e roofline, cheap bump
    return 1 << 20              # v5e / v4 / unknown: 1 MiB, always safe


def _choose_block_rows(rows, cols, itemsize):
    """Pick the row-block size for a (rows, cols) slab.

    If the whole slab fits in one target-sized block, use a single
    full-extent block (grid=(1,)) -- no forced split on small inputs.
    Otherwise use a sublane-aligned block near the per-generation byte
    target; the last grid block may overhang (Pallas masks it).
    """
    row_bytes = max(1, cols * itemsize)
    target_rows = max(_SUB, (_target_block_bytes() // row_bytes) // _SUB * _SUB)
    if rows <= target_rows:
        return rows              # full extent: legal regardless of alignment
    return target_rows           # multiple of 8


def _run_slab(slab):
    rows, cols = slab.shape
    block_rows = _choose_block_rows(rows, cols, slab.dtype.itemsize)
    grid = (pl.cdiv(rows, block_rows),)
    # TODO(synk): if a profile ever shows exposed DMA at this block size, try
    # pipeline_mode=pl.Buffered(3) on the specs; if a v7x profile shows one
    # TensorCore idle, switch to pltpu.CORE_PARALLEL / pl.core_map.
    return pl.pallas_call(
        _gelu_chain_kernel,
        out_shape=jax.ShapeDtypeStruct(slab.shape, slab.dtype),
        grid_spec=pltpu.PrefetchScalarGridSpec(
            num_scalar_prefetch=0,
            grid=grid,
            in_specs=[pl.BlockSpec((block_rows, cols), lambda i: (i, 0))],
            out_specs=pl.BlockSpec((block_rows, cols), lambda i: (i, 0)),
        ),
        compiler_params=pltpu.CompilerParams(
            dimension_semantics=("parallel",)),
    )(slab)


def model_forward(x):
    """x: (N, C, H, W) float32 -> same shape/dtype."""
    orig_shape = x.shape
    n = x.size
    if n == 0:
        return x

    if n % _LANE == 0 and n >= _LANE:
        # Fast path: free reshape to a lane-dense (rows, 128) slab.
        rows = n // _LANE
        out = _run_slab(x.reshape(rows, _LANE))
        return out.reshape(orig_shape)

    # Ragged fallback: keep the natural trailing dim as the lane axis.
    # Lanes < 128 mean masked partial stores, but there are no pad / slice
    # HBM round trips and the result is exact.
    if x.ndim >= 2:
        cols = orig_shape[-1]
        rows = n // cols
    else:
        cols, rows = n, 1
    out = _run_slab(x.reshape(rows, cols))
    return out.reshape(orig_shape)


if __name__ == "__main__":
    key = jax.random.PRNGKey(0)
    tol = 5e-6   # tanh-identity sigmoid differs from exp-form by a few ulps

    # Small shape consistent with the module (NCHW) -- single-block path.
    x_small = jax.random.normal(key, (2, 4, 16, 16), dtype=jnp.float32)
    y_small = model_forward(x_small)
    jax.block_until_ready(y_small)
    assert y_small.shape == x_small.shape and y_small.dtype == x_small.dtype
    assert jnp.max(jnp.abs(y_small - _chain_ref(x_small))) < tol

    # Original module shape (1,3,64,64): 128-aligned fast path, grid=(1,).
    x_orig = jax.random.normal(jax.random.PRNGKey(1), (1, 3, 64, 64),
                               dtype=jnp.float32)
    y_orig = model_forward(x_orig)
    jax.block_until_ready(y_orig)
    assert jnp.max(jnp.abs(y_orig - _chain_ref(x_orig))) < tol

    # Ragged element count exercises the no-pad fallback path.
    x_rag = jax.random.normal(jax.random.PRNGKey(2), (2, 3, 5, 7),
                              dtype=jnp.float32)
    y_rag = model_forward(x_rag)
    jax.block_until_ready(y_rag)
    assert jnp.max(jnp.abs(y_rag - _chain_ref(x_rag))) < tol

    print("KERNEL_OK")
</pallas_src>

<mosaic_0001>
module attributes {stable_mosaic.version = 11 : i64} {
  func.func @_gelu_chain_kernel(%arg0: i32, %arg1: memref<16x128xf32, #tpu.memory_space<vmem>>, %arg2: memref<16x128xf32, #tpu.memory_space<vmem>>) attributes {dimension_semantics = [#tpu.dimension_semantics<parallel>], iteration_bounds = array<i64: 1>, scalar_prefetch = 0 : i64, scratch_operands = 0 : i64, tpu.core_type = #tpu.core_type<tc>, window_params = [{transform_indices = @transform_0, window_bounds = array<i64: 16, 128>}, {transform_indices = @transform_1, window_bounds = array<i64: 16, 128>}]} {
    %c0 = arith.constant 0 : index
    %c0_0 = arith.constant 0 : index
    %0 = vector.load %arg1[%c0, %c0_0] : memref<16x128xf32, #tpu.memory_space<vmem>>, vector<16x128xf32>
    %cst = arith.constant 0.000000e+00 : f32
    %1 = vector.broadcast %cst : f32 to vector<16x128xf32>
    %2 = arith.maximumf %0, %1 : vector<16x128xf32>
    %cst_1 = arith.constant 5.000000e-01 : f32
    %3 = vector.broadcast %cst_1 : f32 to vector<16x128xf32>
    %4 = arith.mulf %2, %3 : vector<16x128xf32>
    %cst_2 = arith.constant 5.000000e-01 : f32
    %5 = vector.broadcast %cst_2 : f32 to vector<16x128xf32>
    %6 = arith.mulf %5, %4 : vector<16x128xf32>
    %7 = math.tanh %6 : vector<16x128xf32>
    %cst_3 = arith.constant 5.000000e-01 : f32
    %8 = vector.broadcast %cst_3 : f32 to vector<16x128xf32>
    %9 = arith.mulf %8, %7 : vector<16x128xf32>
    %cst_4 = arith.constant 5.000000e-01 : f32
    %10 = vector.broadcast %cst_4 : f32 to vector<16x128xf32>
    %11 = arith.addf %9, %10 : vector<16x128xf32>
    %cst_5 = arith.constant 0.707106769 : f32
    %12 = vector.broadcast %cst_5 : f32 to vector<16x128xf32>
    %13 = arith.mulf %11, %12 : vector<16x128xf32>
    %cst_6 = arith.constant 5.000000e-01 : f32
    %14 = vector.broadcast %cst_6 : f32 to vector<16x128xf32>
    %15 = arith.mulf %14, %13 : vector<16x128xf32>
    %16 = math.tanh %15 : vector<16x128xf32>
    %cst_7 = arith.constant 5.000000e-01 : f32
    %17 = vector.broadcast %cst_7 : f32 to vector<16x128xf32>
    %18 = arith.mulf %17, %16 : vector<16x128xf32>
    %cst_8 = arith.constant 5.000000e-01 : f32
    %19 = vector.broadcast %cst_8 : f32 to vector<16x128xf32>
    %20 = arith.addf %18, %19 : vector<16x128xf32>
    %cst_9 = arith.constant 0.707106769 : f32
    %21 = vector.broadcast %cst_9 : f32 to vector<16x128xf32>
    %22 = arith.mulf %20, %21 : vector<16x128xf32>
    %c0_10 = arith.constant 0 : index
    %c0_11 = arith.constant 0 : index
    %23 = vector.load %arg2[%c0_10, %c0_11] : memref<16x128xf32, #tpu.memory_space<vmem>>, vector<16x128xf32>
    tpu.vector_store %arg2[%c0_10, %c0_11], %22 {strides = array<i32>} : memref<16x128xf32, #tpu.memory_space<vmem>>, vector<16x128xf32>,
    return
  }
  func.func @transform_0(%arg0: i32) -> (i32, i32) {
    %c0_i32 = arith.constant 0 : i32
    %c0_i32_0 = arith.constant 0 : i32
    return %arg0, %c0_i32 : i32, i32
  }
  func.func @transform_1(%arg0: i32) -> (i32, i32) {
    %c0_i32 = arith.constant 0 : i32
    %c0_i32_0 = arith.constant 0 : i32
    return %arg0, %c0_i32 : i32, i32
  }
}

</mosaic_0001>

<llo_original>
// kernel: tpu_custom_call.1
$region0: #{tpu_custom_call.1}
  #allocation0 [shape = 'u32[]', space=smem, size = 0x4, offset = 0x4, fixed_abs, tag = 'smem constant byte address 0x4 - core index']
  #allocation1 [shape = 'u32[144,128]{1,0:T(1,128)}', space=vmem, size = 0x12000, scoped, tag = 'internal scratch']
  %s0 = inlined_call_operand.hbm [shape: f32[16,128], index: 0, kind: input, shape index: {}]
  %s1 = inlined_call_operand.hbm [shape: f32[16,128], index: 1, kind: output, shape index: {}]
  %s2 = sld [smem:[#allocation0]]
  $region18: #{tpu_custom_call.1} parent=0
    _
  %s4 = ssub.s32 1, %s2
  %s5 = scalar_select 0, %s4, %s2
  $region1: #{tpu_custom_call.1} parent=0
    #allocation2 [shape = 'u8[8192]{0}', space=vmem, size = 0x2000, scoped, tag = 'input window, operand 0, single buffered']
    #allocation3 [shape = 's32[1]{0}', space=sflag, size = 0x4, scoped, tag = 'scoped memory for tpu_custom_call.1']
    #allocation4 [shape = 's32[1]{0}', space=sflag, size = 0x4, scoped, tag = 'scoped memory for tpu_custom_call.1']
    #allocation5 [shape = 'u8[8192]{0}', space=vmem, size = 0x2000, scoped, tag = 'output window, operand 0, single buffered']
    %6 = vsyncpa [#allocation3], 0
    %7 = vsyncpa [#allocation4], 0
    // Predicated region
    $region2: #{tpu_custom_call.1} parent=1 // pred_check
      _
    $region3: #{tpu_custom_call.1} parent=1 // pred_check_branch
      %9 = sbr.rel (0) target = $region5
    $region4: #{tpu_custom_call.1} parent=1 // pred_region
      %s11 = ssub.s32 256, 256
      %12 = vsyncadd [#allocation3], %s11
      %s13 = sshll.u32 [#allocation2], 4
      %s14 = int_to_ptr.vmem [resolvable:$true] %s13
      %19 = dma.hbm_to_vmem [thread:$0]  %s0, 256, %s14, [#allocation3], 128, 128, 8
    $region5: #{tpu_custom_call.1} parent=1 // pred_fallthru
      _
    // Predicated region
    $region6: #{tpu_custom_call.1} parent=1 // pred_check
      _
    $region7: #{tpu_custom_call.1} parent=1 // pred_check_branch
      %21 = sbr.rel (0) target = $region9
    $region8: #{tpu_custom_call.1} parent=1 // pred_region
      %22 = dma.done [#allocation3], 256
    $region9: #{tpu_custom_call.1} parent=1 // pred_fallthru
      _
    %v23 = vld [vmem:[#allocation2] sm:$0xff]
    %v24 = vld [vmem:[#allocation2 + $0x8] sm:$0xff]
    %v25 = vmax.f32 %v23, 0.0
    %v26 = vmax.f32 %v24, 0.0
    %v27 = vmul.f32 %v25, 0.5
    %v28 = vmul.f32 %v26, 0.5
    %v29 = vmul.f32 %v27, 0.5
    %v30 = vmul.f32 %v28, 0.5
    %v31 = vtanh.pop %v29
    %v32 = vtanh.pop %v30
    %v33 = vmul.f32 %v31, 0.5
    %v34 = vmul.f32 %v32, 0.5
    %v35 = vadd.f32 %v33, 0.5
    %v36 = vadd.f32 %v34, 0.5
    %v37 = vmul.f32 %v35, 0.70710677
    %v38 = vmul.f32 %v36, 0.70710677
    %v39 = vmul.f32 %v37, 0.5
    %v40 = vmul.f32 %v38, 0.5
    %v41 = vtanh.pop %v39
    %v42 = vtanh.pop %v40
    %v43 = vmul.f32 %v41, 0.5
    %v44 = vmul.f32 %v42, 0.5
    %v45 = vadd.f32 %v43, 0.5
    %v46 = vadd.f32 %v44, 0.5
    %v47 = vmul.f32 %v45, 0.70710677
    %v48 = vmul.f32 %v46, 0.70710677
    %49 = vst [vmem:[#allocation5] sm:$0xff] %v47
    %50 = vst [vmem:[#allocation5 + $0x8] sm:$0xff] %v48
    // Predicated region
    $region10: #{tpu_custom_call.1} parent=1 // pred_check
      _
    $region11: #{tpu_custom_call.1} parent=1 // pred_check_branch
      %52 = sbr.rel (0) target = $region13
    $region12: #{tpu_custom_call.1} parent=1 // pred_region
      %s54 = ssub.s32 256, 256
      %55 = vsyncadd [#allocation4], %s54
      %s56 = sshll.u32 [#allocation5], 4
      %s57 = int_to_ptr.vmem [resolvable:$true] %s56
      %62 = dma.vmem_to_hbm [thread:$0]  %s57, 256, %s1, [#allocation4], 128, 128, 8
    $region13: #{tpu_custom_call.1} parent=1 // pred_fallthru
      _
    // Predicated region
    $region14: #{tpu_custom_call.1} parent=1 // pred_check
      _
    $region15: #{tpu_custom_call.1} parent=1 // pred_check_branch
      %64 = sbr.rel (0) target = $region17
    $region16: #{tpu_custom_call.1} parent=1 // pred_region
      %65 = dma.done [#allocation4], 256
    $region17: #{tpu_custom_call.1} parent=1 // pred_fallthru
      _
    %66 = vsyncpa [#allocation3], 1
    %67 = vsyncpa [#allocation4], 1

</llo_original>
